<compile_context>
chip_gen: v5e
topology: v5e:2x2
jax: 0.10.0
libtpu: 0.0.40
codegen_flags: <defaults>
</compile_context>

<pallas_src>
import functools

import jax
import jax.numpy as jnp
from jax import lax
from jax.experimental import pallas as pl
from jax.experimental.pallas import tpu as pltpu


def _round_up(n, m):
    return ((n + m - 1) // m) * m


def _head_kernel(x_ref, w_ref, b_ref, o_ref):
    # x_ref: (TM, KC) patch tile, w_ref: (KC, C_out), b_ref: (1, C_out), o_ref: (TM, C_out)
    acc = jnp.dot(x_ref[...], w_ref[...], preferred_element_type=jnp.float32)
    o_ref[...] = (acc + b_ref[...]).astype(o_ref.dtype)


@functools.partial(jax.jit, static_argnames=("scale_factor", "input_dtype"))
def detection_head_forward(x, conv_weight, conv_bias, *, scale_factor, input_dtype=None):
    """
    x           : (B, T, C)   float32, T divisible by scale_factor
    conv_weight : (C_out, C, K) with K == scale_factor   (PyTorch Conv1d layout)
    conv_bias   : (C_out,)
    input_dtype : optional dtype (e.g. jnp.bfloat16) for the matmul inputs; accumulation
                  and bias add stay float32.
    Returns (detection_logits (B, T_out), reg (B, T_out), class_logits (B, T_out, C_out-2))
    """
    B, T, C = x.shape
    C_out, C_in, K = conv_weight.shape
    assert C_in == C and K == scale_factor and T % K == 0
    T_out = T // K
    M = B * T_out
    KC = K * C

    # Flatten non-overlapping patches: (B, T_out, K, C) -> (B*T_out, K*C)
    x_patches = x.reshape(B, T_out, K, C).reshape(M, KC)
    # Conv weight (C_out, C, K) -> W_flat (K*C, C_out), matching patch flattening order.
    w_flat = jnp.transpose(conv_weight, (2, 1, 0)).reshape(KC, C_out)
    b_row = conv_bias.reshape(1, C_out).astype(jnp.float32)

    if input_dtype is not None:
        x_patches = x_patches.astype(input_dtype)
        w_flat = w_flat.astype(input_dtype)
    in_bytes = x_patches.dtype.itemsize
    out_dtype = x.dtype

    # ---- Tile the M axis: biggest tile that keeps the double-buffered x stream in budget.
    x_budget = 16 * 1024 * 1024  # bytes for the 2x double-buffered x tile
    tm = max(16, x_budget // (2 * KC * in_bytes))
    tm = min(tm, 4096)
    tm = max(16, (tm // 16) * 16)          # multiple of 16: valid sublane tiling for f32 & bf16
    m_align = _round_up(M, 16)
    tm = min(tm, m_align)
    m_pad = _round_up(M, tm)
    if m_pad != M:
        x_patches = jnp.pad(x_patches, ((0, m_pad - M), (0, 0)))

    grid = (m_pad // tm,)
    cost = pl.CostEstimate(
        flops=2 * m_pad * KC * C_out,
        transcendentals=0,
        bytes_accessed=(m_pad * KC + KC * C_out) * in_bytes
        + (m_pad * C_out) * jnp.dtype(out_dtype).itemsize
        + C_out * 4,
    )

    out = pl.pallas_call(
        _head_kernel,
        out_shape=jax.ShapeDtypeStruct((m_pad, C_out), out_dtype),
        grid_spec=pl.GridSpec(
            grid=grid,
            in_specs=[
                pl.BlockSpec((tm, KC), lambda i: (i, 0)),      # streamed + auto double-buffered
                pl.BlockSpec((KC, C_out), lambda i: (0, 0)),   # VMEM-resident weights
                pl.BlockSpec((1, C_out), lambda i: (0, 0)),    # VMEM-resident bias
            ],
            out_specs=pl.BlockSpec((tm, C_out), lambda i: (i, 0)),
        ),
        compiler_params=pltpu.CompilerParams(
            dimension_semantics=("parallel",),      # megacore-shardable (v7x: 2 TCs)
            vmem_limit_bytes=32 * 1024 * 1024,      # lift v5e's 16 MiB default scoped limit
        ),
        cost_estimate=cost,
    )(x_patches, w_flat, b_row)

    out = out[:M].reshape(B, T_out, C_out)
    detection_logits = out[:, :, 0]
    reg = out[:, :, 1]
    class_logits = out[:, :, 2:]
    return detection_logits, reg, class_logits


def _reference_forward(x, conv_weight, conv_bias, *, scale_factor):
    # Pure-JAX reference using conv_general_dilated (NCW, OIW), mirrors nn.Conv1d.
    x_ncw = jnp.transpose(x, (0, 2, 1))
    y = lax.conv_general_dilated(
        x_ncw, conv_weight,
        window_strides=(scale_factor,), padding="VALID",
        dimension_numbers=("NCH", "OIH", "NCH"),
    )
    y = y + conv_bias[None, :, None]
    y = jnp.transpose(y, (0, 2, 1))
    return y[:, :, 0], y[:, :, 1], y[:, :, 2:]


if __name__ == "__main__":
    # Small shapes consistent with the module:
    B = 2                    # batch
    T = 16                   # time at audio sr
    C = 32                   # embedding_dim
    K = 4                    # args.prediction_scale_factor (kernel_size == stride)
    N_CLASSES = 3            # len(args.label_set)
    C_OUT = 2 + N_CLASSES

    key = jax.random.PRNGKey(0)
    kx, kw, kb = jax.random.split(key, 3)
    x = jax.random.normal(kx, (B, T, C), dtype=jnp.float32)
    # Deterministic Conv1d-style init (uniform, same fan-in scaling as PyTorch).
    fan_in = C * K
    bound = 1.0 / (fan_in ** 0.5)
    conv_weight = jax.random.uniform(kw, (C_OUT, C, K), jnp.float32, -bound, bound)
    conv_bias = jax.random.uniform(kb, (C_OUT,), jnp.float32, -bound, bound)

    det_r, reg_r, cls_r = _reference_forward(x, conv_weight, conv_bias, scale_factor=K)

    # Full-precision path (matches the PyTorch module's semantics).
    det, reg, cls = detection_head_forward(x, conv_weight, conv_bias, scale_factor=K)
    jax.block_until_ready((det, reg, cls))
    assert det.shape == (B, T // K) and reg.shape == (B, T // K)
    assert cls.shape == (B, T // K, N_CLASSES)
    assert jnp.allclose(det, det_r, atol=1e-5)
    assert jnp.allclose(reg, reg_r, atol=1e-5)
    assert jnp.allclose(cls, cls_r, atol=1e-5)

    # bf16-input path (halves the dominant HBM read traffic; f32 accumulation).
    det_b, reg_b, cls_b = detection_head_forward(
        x, conv_weight, conv_bias, scale_factor=K, input_dtype=jnp.bfloat16)
    jax.block_until_ready((det_b, reg_b, cls_b))
    assert jnp.allclose(det_b, det_r, atol=5e-2)
    assert jnp.allclose(reg_b, reg_r, atol=5e-2)
    assert jnp.allclose(cls_b, cls_r, atol=5e-2)

    print("KERNEL_OK")
</pallas_src>

<mosaic_0001>
module attributes {stable_mosaic.version = 11 : i64} {
  func.func @_head_kernel(%arg0: i32, %arg1: memref<16x128xf32, #tpu.memory_space<vmem>>, %arg2: memref<128x5xf32, #tpu.memory_space<vmem>>, %arg3: memref<1x5xf32, #tpu.memory_space<vmem>>, %arg4: memref<16x5xf32, #tpu.memory_space<vmem>>) attributes {dimension_semantics = [#tpu.dimension_semantics<parallel>], iteration_bounds = array<i64: 1>, scalar_prefetch = 0 : i64, scratch_operands = 0 : i64, tpu.core_type = #tpu.core_type<tc>, window_params = [{transform_indices = @transform_0, window_bounds = array<i64: 16, 128>}, {pipeline_mode = #tpu.pipeline_mode<synchronous>, transform_indices = @transform_1, window_bounds = array<i64: 128, 5>}, {pipeline_mode = #tpu.pipeline_mode<synchronous>, transform_indices = @transform_2, window_bounds = array<i64: 1, 5>}, {transform_indices = @transform_3, window_bounds = array<i64: 16, 5>}]} {
    %c0 = arith.constant 0 : index
    %c0_0 = arith.constant 0 : index
    %0 = vector.load %arg1[%c0, %c0_0] : memref<16x128xf32, #tpu.memory_space<vmem>>, vector<16x128xf32>
    %c0_1 = arith.constant 0 : index
    %c0_2 = arith.constant 0 : index
    %1 = vector.load %arg2[%c0_1, %c0_2] : memref<128x5xf32, #tpu.memory_space<vmem>>, vector<128x5xf32>
    %cst = arith.constant dense<0.000000e+00> : vector<16x5xf32>
    %2 = tpu.matmul %0, %1, %cst {dimension_numbers = #tpu.dot_dimension_numbers<[1], [0], [0], [1], [0, 0, 1, 1], [], []>} : vector<16x128xf32>, vector<128x5xf32>, vector<16x5xf32> -> vector<16x5xf32>
    %c0_3 = arith.constant 0 : index
    %c0_4 = arith.constant 0 : index
    %3 = vector.load %arg3[%c0_3, %c0_4] : memref<1x5xf32, #tpu.memory_space<vmem>>, vector<1x5xf32>
    %4 = vector.broadcast %3 : vector<1x5xf32> to vector<16x5xf32>
    %5 = arith.addf %2, %4 : vector<16x5xf32>
    %c0_5 = arith.constant 0 : index
    %c0_6 = arith.constant 0 : index
    %6 = vector.load %arg4[%c0_5, %c0_6] : memref<16x5xf32, #tpu.memory_space<vmem>>, vector<16x5xf32>
    tpu.vector_store %arg4[%c0_5, %c0_6], %5 {strides = array<i32>} : memref<16x5xf32, #tpu.memory_space<vmem>>, vector<16x5xf32>,
    return
  }
  func.func @transform_0(%arg0: i32) -> (i32, i32) {
    %c0_i32 = arith.constant 0 : i32
    %c0_i32_0 = arith.constant 0 : i32
    return %arg0, %c0_i32 : i32, i32
  }
  func.func @transform_1(%arg0: i32) -> (i32, i32) {
    %c0_i32 = arith.constant 0 : i32
    %c0_i32_0 = arith.constant 0 : i32
    %c0_i32_1 = arith.constant 0 : i32
    return %c0_i32, %c0_i32_0 : i32, i32
  }
  func.func @transform_2(%arg0: i32) -> (i32, i32) {
    %c0_i32 = arith.constant 0 : i32
    %c0_i32_0 = arith.constant 0 : i32
    %c0_i32_1 = arith.constant 0 : i32
    return %c0_i32, %c0_i32_0 : i32, i32
  }
  func.func @transform_3(%arg0: i32) -> (i32, i32) {
    %c0_i32 = arith.constant 0 : i32
    %c0_i32_0 = arith.constant 0 : i32
    return %arg0, %c0_i32 : i32, i32
  }
}

</mosaic_0001>

<llo_original>
// kernel: detection_head_forward.1
$region0: #{detection_head_forward.1}
  #allocation0 [shape = 'u32[]', space=smem, size = 0x4, offset = 0x4, fixed_abs, tag = 'smem constant byte address 0x4 - core index']
  #allocation1 [shape = 'u32[72,128]{1,0:T(1,128)}', space=vmem, size = 0x9000, scoped, tag = 'internal scratch']
  %s0 = inlined_call_operand.vmem [shape: f32[16,128], index: 0, kind: input, shape index: {}]
  %s1 = inlined_call_operand.vmem [shape: f32[128,5], index: 1, kind: input, shape index: {}]
  %s2 = inlined_call_operand.vmem [shape: f32[1,5], index: 2, kind: input, shape index: {}]
  %s3 = inlined_call_operand.vmem [shape: f32[16,5], index: 3, kind: output, shape index: {}]
  %s4 = sld [smem:[#allocation0]]
  $region22: #{detection_head_forward.1} parent=0
    _
  %s6 = ssub.s32 1, %s4
  %s7 = scalar_select 0, %s6, %s4
  // Predicated region
  $region2: #{detection_head_forward.1} parent=0 // pred_check
    _
  $region3: #{detection_head_forward.1} parent=0 // pred_check_branch
    %9 = sbr.rel (0) target = $region5
  $region4: #{detection_head_forward.1} parent=0 // pred_region
    _
  $region5: #{detection_head_forward.1} parent=0 // pred_fallthru
    _
  // Predicated region
  $region6: #{detection_head_forward.1} parent=0 // pred_check
    _
  $region7: #{detection_head_forward.1} parent=0 // pred_check_branch
    %11 = sbr.rel (0) target = $region9
  $region8: #{detection_head_forward.1} parent=0 // pred_region
    _
  $region9: #{detection_head_forward.1} parent=0 // pred_fallthru
    _
  // Predicated region
  $region10: #{detection_head_forward.1} parent=0 // pred_check
    _
  $region11: #{detection_head_forward.1} parent=0 // pred_check_branch
    %13 = sbr.rel (0) target = $region13
  $region12: #{detection_head_forward.1} parent=0 // pred_region
    _
  $region13: #{detection_head_forward.1} parent=0 // pred_fallthru
    _
  %v14 = vld [vmem:[%s0] sm:$0xff]
  %v15 = vld [vmem:[%s0 + $0x8] sm:$0xff]
  %v16 = vld [vmem:[%s1] sm:$0xff]
  %v17 = vld [vmem:[%s1 + $0x8] sm:$0xff]
  %v18 = vld [vmem:[%s1 + $0x10] sm:$0xff]
  %v19 = vld [vmem:[%s1 + $0x18] sm:$0xff]
  %v20 = vld [vmem:[%s1 + $0x20] sm:$0xff]
  %v21 = vld [vmem:[%s1 + $0x28] sm:$0xff]
  %v22 = vld [vmem:[%s1 + $0x30] sm:$0xff]
  %v23 = vld [vmem:[%s1 + $0x38] sm:$0xff]
  %v24 = vld [vmem:[%s1 + $0x40] sm:$0xff]
  %v25 = vld [vmem:[%s1 + $0x48] sm:$0xff]
  %v26 = vld [vmem:[%s1 + $0x50] sm:$0xff]
  %v27 = vld [vmem:[%s1 + $0x58] sm:$0xff]
  %v28 = vld [vmem:[%s1 + $0x60] sm:$0xff]
  %v29 = vld [vmem:[%s1 + $0x68] sm:$0xff]
  %v30 = vld [vmem:[%s1 + $0x70] sm:$0xff]
  %v31 = vld [vmem:[%s1 + $0x78] sm:$0xff]
  %v32 = vld [vmem:[%s2] sm:$0x1]
  %v34 = vperm.slane %v32, 0
  %36 = vmatpush.msra.mxu0 %v31
  %37 = vmatpush.msra.mxu0 %v30
  %38 = vmatpush.msra.mxu0 %v29
  %39 = vmatpush.msra.mxu0 %v28
  %40 = vmatpush.msra.mxu0 %v27
  %41 = vmatpush.msra.mxu0 %v26
  %42 = vmatpush.msra.mxu0 %v25
  %43 = vmatpush.msra.mxu0 %v24
  %44 = vmatpush.msra.mxu0 %v23
  %45 = vmatpush.msra.mxu0 %v22
  %46 = vmatpush.msra.mxu0 %v21
  %47 = vmatpush.msra.mxu0 %v20
  %48 = vmatpush.msra.mxu0 %v19
  %49 = vmatpush.msra.mxu0 %v18
  %50 = vmatpush.msra.mxu0 %v17
  %51 = vmatpush.msra.mxu0 %v16
  %52 = vmatmul.f32.gmra.mxu0 %v14
  %v53 = vpop.f32.mrf.mxu0
  %v54 = vadd.f32 %v34, %v53
  %55 = vmatmul.f32.gmra.mxu0 %v15
  %v56 = vpop.f32.mrf.mxu0
  %v57 = vadd.f32 %v34, %v56
  %58 = vdwg.mxu0
  %vm59 = vcmask 39936
  %60 = vst.msk [vmem:[%s3] sm:$0xff] %vm59, %v54
  %61 = vst.msk [vmem:[%s3 + $0x8] sm:$0xff] %vm59, %v57
  // Predicated region
  $region14: #{detection_head_forward.1} parent=0 // pred_check
    _
  $region15: #{detection_head_forward.1} parent=0 // pred_check_branch
    %63 = sbr.rel (0) target = $region17
  $region16: #{detection_head_forward.1} parent=0 // pred_region
    _
  $region17: #{detection_head_forward.1} parent=0 // pred_fallthru
    _
  // Predicated region
  $region18: #{detection_head_forward.1} parent=0 // pred_check
    _
  $region19: #{detection_head_forward.1} parent=0 // pred_check_branch
    %65 = sbr.rel (0) target = $region21
  $region20: #{detection_head_forward.1} parent=0 // pred_region
    _
  $region21: #{detection_head_forward.1} parent=0 // pred_fallthru
    _

</llo_original>
